<compile_context>
chip_gen: v7x
topology: tpu7x:2x2x1
jax: 0.10.0
libtpu: 0.0.40
codegen_flags: <defaults>
</compile_context>

<pallas_src>
import functools

import jax
import jax.numpy as jnp
from jax.experimental import pallas as pl
from jax.experimental.pallas import tpu as pltpu


# ----------------------------------------------------------------------------
# Kernel
# ----------------------------------------------------------------------------
def _nnbeam_kernel(x_ref, w_in_ref, b_in_ref, *refs, n_hidden, compute_dtype):
    if n_hidden > 0:
        w_h_ref, b_h_ref, w_out_ref, b_out_ref, o_ref = refs
    else:
        w_out_ref, b_out_ref, o_ref = refs
        w_h_ref = b_h_ref = None

    # x_ref: (6, tm) lane-dense tile (batch on lanes).
    x = x_ref[...].astype(compute_dtype)

    # Input layer + Tanh: (W, 6) @ (6, tm) + (W, 1) -> (W, tm), lane-dense tanh.
    # (bias add stays f32; tanh runs in compute_dtype -> bf16 EUP on v6e/v7x)
    h = jnp.tanh(
        (jnp.dot(w_in_ref[...], x, preferred_element_type=jnp.float32)
         + b_in_ref[...]).astype(compute_dtype))

    # Hidden layers: Linear -> Dropout (identity at inference) -> Tanh.
    for k in range(n_hidden):
        h = jnp.tanh(
            (jnp.dot(w_h_ref[k], h, preferred_element_type=jnp.float32)
             + b_h_ref[k]).astype(compute_dtype))

    # Output layer; output_scale is already folded into w_out/b_out.
    o_ref[...] = (jnp.dot(w_out_ref[...], h, preferred_element_type=jnp.float32)
                  + b_out_ref[...]).astype(o_ref.dtype)


# ----------------------------------------------------------------------------
# Wrapper helpers
# ----------------------------------------------------------------------------
def _default_compute_dtype():
    """bf16 on v6e/v7x (bf16 VPU/EUP, native MXU); f32 elsewhere (incl. v5e)."""
    try:
        kind = jax.devices()[0].device_kind.lower()
    except Exception:
        return jnp.float32
    if "v6" in kind or "v7" in kind:
        return jnp.bfloat16
    return jnp.float32


def _choose_tile(n, tm, compute_dtype):
    """Pick a lane-aligned batch tile and the padded batch size."""
    if tm is None:
        # Big tiles amortize the ~0.35 us per-grid-step overhead; bf16 halves
        # activation VMEM so it can go bigger.  (v5e ends up on the f32 path.)
        tm = 16384 if jnp.dtype(compute_dtype) == jnp.dtype(jnp.bfloat16) else 8192
    tm = max(128, (int(tm) // 128) * 128)
    n_groups = pl.cdiv(n, 128)                  # 128-wide lane groups of batch
    if n_groups >= 2:
        # Keep the 1-D grid at >= 2 steps so "parallel" can shard across both
        # v7x TensorCores (and pipelining has something to overlap).
        tm = min(tm, (n_groups // 2) * 128)
    else:
        tm = 128
    n_pad = pl.cdiv(n, tm) * tm
    return tm, n_pad


def _vmem_budget(tm, width, n_hidden, compute_dtype, io_dtype):
    """Scoped-VMEM request: resident weights + double-buffered I/O tiles +
    live (W, tm) activation temporaries, with headroom.  Capped at 64 MiB so it
    is valid on v7x physical VMEM as well as v5e/v6e."""
    cb = jnp.dtype(compute_dtype).itemsize
    ib = jnp.dtype(io_dtype).itemsize
    weights = (6 * width + 6 * width + n_hidden * width * width) * cb \
              + (width + n_hidden * width + 6) * 4
    io = 2 * 2 * 6 * tm * ib                    # double-buffered x + out tiles
    act = 4 * width * tm * max(cb, 4)           # f32 accumulators / live temps
    est = weights + io + act
    return int(min(max(2 * est + (8 << 20), 32 << 20), 64 << 20))


# ----------------------------------------------------------------------------
# Forward passes
# ----------------------------------------------------------------------------
def nnbeam_forward_t(xt, params, *, n_hidden, output_scale, tm=None,
                     compute_dtype=None):
    """NNBeam forward in the transposed layout: xt is (6, N), returns (6, N).

    Use this directly when the producer/consumer can keep the (6, N) layout
    (e.g. chained NNBeam evaluations) — it skips the two wrapper HBM transpose
    passes of nnbeam_forward.
    """
    d_in, n = xt.shape
    assert d_in == 6
    width = params["w_in"].shape[0]
    if compute_dtype is None:
        compute_dtype = _default_compute_dtype()

    tm, n_pad = _choose_tile(n, tm, compute_dtype)
    if n_pad != n:
        xt = jnp.pad(xt, ((0, 0), (0, n_pad - n)))

    # Fold output_scale into the last layer at trace time (removes a (6,tm)
    # VPU multiply per tile; a traced scale is just a tiny XLA mul, no recompile).
    scale = jnp.asarray(output_scale, jnp.float32)
    w_in = params["w_in"].astype(compute_dtype)                   # (W, 6)
    b_in = params["b_in"].reshape(width, 1).astype(jnp.float32)   # (W, 1)
    w_out = (params["w_out"].astype(jnp.float32) * scale).astype(compute_dtype)
    b_out = (params["b_out"].astype(jnp.float32) * scale).reshape(6, 1)

    vmem = pl.BlockSpec(memory_space=pltpu.MemorySpace.VMEM)      # resident, no per-step DMA
    x_spec = pl.BlockSpec((6, tm), lambda i: (0, i))              # lane-dense tile
    out_spec = pl.BlockSpec((6, tm), lambda i: (0, i))

    args = [xt, w_in, b_in]
    specs = [x_spec, vmem, vmem]
    if n_hidden > 0:
        args += [params["w_h"].astype(compute_dtype),             # (n_h, W, W)
                 params["b_h"].reshape(n_hidden, width, 1).astype(jnp.float32)]
        specs += [vmem, vmem]
    args += [w_out, b_out]
    specs += [vmem, vmem]

    kernel = functools.partial(_nnbeam_kernel, n_hidden=n_hidden,
                               compute_dtype=compute_dtype)

    out_t = pl.pallas_call(
        kernel,
        out_shape=jax.ShapeDtypeStruct((6, n_pad), xt.dtype),
        grid_spec=pl.GridSpec(
            grid=(n_pad // tm,),
            in_specs=specs,
            out_specs=out_spec,
        ),
        compiler_params=pltpu.CompilerParams(
            dimension_semantics=("parallel",),
            vmem_limit_bytes=_vmem_budget(tm, width, n_hidden, compute_dtype,
                                          xt.dtype)),
    )(*args)

    if n_pad != n:
        out_t = out_t[:, :n]
    return out_t


def nnbeam_forward(x, params, *, n_hidden, output_scale, tm=None,
                   compute_dtype=None):
    """Torch-interface NNBeam forward: x is (N, 6), returns (N, 6)."""
    out_t = nnbeam_forward_t(x.T, params, n_hidden=n_hidden,
                             output_scale=output_scale, tm=tm,
                             compute_dtype=compute_dtype)
    return out_t.T


# ----------------------------------------------------------------------------
# Params / reference
# ----------------------------------------------------------------------------
def init_nnbeam_params(key, n_hidden, width):
    """Init matching PyTorch nn.Linear bounds, torch weight layout (out, in)."""
    ks = jax.random.split(key, 2 * (n_hidden + 2))
    ki = iter(ks)

    def linear(fan_in, fan_out):
        bound = 1.0 / jnp.sqrt(jnp.float32(fan_in))
        w = jax.random.uniform(next(ki), (fan_out, fan_in),
                               minval=-bound, maxval=bound, dtype=jnp.float32)
        b = jax.random.uniform(next(ki), (fan_out,),
                               minval=-bound, maxval=bound, dtype=jnp.float32)
        return w, b

    w_in, b_in = linear(6, width)
    w_hs, b_hs = [], []
    for _ in range(n_hidden):
        w, b = linear(width, width)
        w_hs.append(w)
        b_hs.append(b)
    w_h = jnp.stack(w_hs) if n_hidden > 0 else jnp.zeros((0, width, width), jnp.float32)
    b_h = jnp.stack(b_hs) if n_hidden > 0 else jnp.zeros((0, width), jnp.float32)
    w_out, b_out = linear(width, 6)

    return {"w_in": w_in, "b_in": b_in, "w_h": w_h, "b_h": b_h,
            "w_out": w_out, "b_out": b_out}


def nnbeam_reference(x, params, *, n_hidden, output_scale):
    """Pure-JAX reference of NNBeam.forward (torch-layout weights)."""
    h = jnp.tanh(x @ params["w_in"].T + params["b_in"])
    for k in range(n_hidden):
        h = jnp.tanh(h @ params["w_h"][k].T + params["b_h"][k])
    return (h @ params["w_out"].T + params["b_out"]) * output_scale


# ----------------------------------------------------------------------------
# Demo / correctness check
# ----------------------------------------------------------------------------
if __name__ == "__main__":
    n_hidden = 2
    width = 32
    output_scale = 0.01
    batch = 256

    key = jax.random.PRNGKey(0)
    k_param, k_x = jax.random.split(key)

    params = init_nnbeam_params(k_param, n_hidden, width)
    x = jax.random.normal(k_x, (batch, 6), dtype=jnp.float32)

    ref = nnbeam_reference(x, params, n_hidden=n_hidden,
                           output_scale=output_scale)

    # f32 path (correct on all generations, incl. v5e)
    out = nnbeam_forward(x, params, n_hidden=n_hidden,
                         output_scale=output_scale, compute_dtype=jnp.float32)
    out = jax.block_until_ready(out)
    assert out.shape == (batch, 6)
    assert jnp.allclose(out, ref, atol=1e-5, rtol=1e-4), "f32 mismatch vs reference"

    # bf16 activations/weights (v6e/v7x default), f32 MXU accumulation kept
    out_bf16 = nnbeam_forward(x, params, n_hidden=n_hidden,
                              output_scale=output_scale,
                              compute_dtype=jnp.bfloat16)
    out_bf16 = jax.block_until_ready(out_bf16)
    assert jnp.allclose(out_bf16, ref, atol=2e-3, rtol=5e-2), "bf16 mismatch vs reference"

    # Unaligned batch exercises the padding path (no single-huge-tile fallback).
    x_odd = jax.random.normal(jax.random.PRNGKey(1), (200, 6), dtype=jnp.float32)
    ref_odd = nnbeam_reference(x_odd, params, n_hidden=n_hidden,
                               output_scale=output_scale)
    out_odd = jax.block_until_ready(
        nnbeam_forward(x_odd, params, n_hidden=n_hidden,
                       output_scale=output_scale, compute_dtype=jnp.float32))
    assert out_odd.shape == (200, 6)
    assert jnp.allclose(out_odd, ref_odd, atol=1e-5, rtol=1e-4), "padded-batch mismatch"

    # n_hidden = 0 path (no hidden-weight operands shipped to VMEM).
    params0 = init_nnbeam_params(jax.random.PRNGKey(2), 0, width)
    ref0 = nnbeam_reference(x, params0, n_hidden=0, output_scale=output_scale)
    out0 = jax.block_until_ready(
        nnbeam_forward(x, params0, n_hidden=0, output_scale=output_scale,
                       compute_dtype=jnp.float32))
    assert jnp.allclose(out0, ref0, atol=1e-5, rtol=1e-4), "n_hidden=0 mismatch"

    print("KERNEL_OK")
</pallas_src>

<mosaic_0001>
module attributes {stable_mosaic.version = 11 : i64} {
  func.func @_nnbeam_kernel(%arg0: i32, %arg1: memref<6x128xf32, #tpu.memory_space<vmem>>, %arg2: memref<32x6xf32, #tpu.memory_space<vmem>>, %arg3: memref<32x1xf32, #tpu.memory_space<vmem>>, %arg4: memref<2x32x32xf32, #tpu.memory_space<vmem>>, %arg5: memref<2x32x1xf32, #tpu.memory_space<vmem>>, %arg6: memref<6x32xf32, #tpu.memory_space<vmem>>, %arg7: memref<6x1xf32, #tpu.memory_space<vmem>>, %arg8: memref<6x128xf32, #tpu.memory_space<vmem>>) attributes {dimension_semantics = [#tpu.dimension_semantics<parallel>], iteration_bounds = array<i64: 2>, scalar_prefetch = 0 : i64, scratch_operands = 0 : i64, tpu.core_type = #tpu.core_type<tc>, window_params = [{transform_indices = @transform_0, window_bounds = array<i64: 6, 128>}, {pipeline_mode = #tpu.pipeline_mode<synchronous>, transform_indices = @transform_1, window_bounds = array<i64: 32, 6>}, {pipeline_mode = #tpu.pipeline_mode<synchronous>, transform_indices = @transform_2, window_bounds = array<i64: 32, 1>}, {pipeline_mode = #tpu.pipeline_mode<synchronous>, transform_indices = @transform_3, window_bounds = array<i64: 2, 32, 32>}, {pipeline_mode = #tpu.pipeline_mode<synchronous>, transform_indices = @transform_4, window_bounds = array<i64: 2, 32, 1>}, {pipeline_mode = #tpu.pipeline_mode<synchronous>, transform_indices = @transform_5, window_bounds = array<i64: 6, 32>}, {pipeline_mode = #tpu.pipeline_mode<synchronous>, transform_indices = @transform_6, window_bounds = array<i64: 6, 1>}, {transform_indices = @transform_7, window_bounds = array<i64: 6, 128>}]} {
    %c0 = arith.constant 0 : index
    %c0_0 = arith.constant 0 : index
    %0 = vector.load %arg1[%c0, %c0_0] : memref<6x128xf32, #tpu.memory_space<vmem>>, vector<6x128xf32>
    %c0_1 = arith.constant 0 : index
    %c0_2 = arith.constant 0 : index
    %1 = vector.load %arg2[%c0_1, %c0_2] : memref<32x6xf32, #tpu.memory_space<vmem>>, vector<32x6xf32>
    %cst = arith.constant dense<0.000000e+00> : vector<32x128xf32>
    %2 = tpu.matmul %1, %0, %cst {dimension_numbers = #tpu.dot_dimension_numbers<[1], [0], [0], [1], [0, 0, 1, 1], [], []>} : vector<32x6xf32>, vector<6x128xf32>, vector<32x128xf32> -> vector<32x128xf32>
    %c0_3 = arith.constant 0 : index
    %c0_4 = arith.constant 0 : index
    %3 = vector.load %arg3[%c0_3, %c0_4] : memref<32x1xf32, #tpu.memory_space<vmem>>, vector<32x1xf32>
    %4 = vector.broadcast %3 : vector<32x1xf32> to vector<32x128xf32>
    %5 = arith.addf %2, %4 : vector<32x128xf32>
    %6 = math.tanh %5 : vector<32x128xf32>
    %c0_5 = arith.constant 0 : index
    %c0_6 = arith.constant 0 : index
    %c0_7 = arith.constant 0 : index
    %7 = vector.load %arg4[%c0_5, %c0_6, %c0_7] : memref<2x32x32xf32, #tpu.memory_space<vmem>>, vector<1x32x32xf32>
    %8 = vector.shape_cast %7 : vector<1x32x32xf32> to vector<32x32xf32>
    %cst_8 = arith.constant dense<0.000000e+00> : vector<32x128xf32>
    %9 = tpu.matmul %8, %6, %cst_8 {dimension_numbers = #tpu.dot_dimension_numbers<[1], [0], [0], [1], [0, 0, 1, 1], [], []>} : vector<32x32xf32>, vector<32x128xf32>, vector<32x128xf32> -> vector<32x128xf32>
    %c0_9 = arith.constant 0 : index
    %c0_10 = arith.constant 0 : index
    %c0_11 = arith.constant 0 : index
    %10 = vector.load %arg5[%c0_9, %c0_10, %c0_11] : memref<2x32x1xf32, #tpu.memory_space<vmem>>, vector<1x32x1xf32>
    %11 = vector.shape_cast %10 : vector<1x32x1xf32> to vector<32x1xf32>
    %12 = vector.broadcast %11 : vector<32x1xf32> to vector<32x128xf32>
    %13 = arith.addf %9, %12 : vector<32x128xf32>
    %14 = math.tanh %13 : vector<32x128xf32>
    %c1 = arith.constant 1 : index
    %c0_12 = arith.constant 0 : index
    %c0_13 = arith.constant 0 : index
    %15 = vector.load %arg4[%c1, %c0_12, %c0_13] : memref<2x32x32xf32, #tpu.memory_space<vmem>>, vector<1x32x32xf32>
    %16 = vector.shape_cast %15 : vector<1x32x32xf32> to vector<32x32xf32>
    %cst_14 = arith.constant dense<0.000000e+00> : vector<32x128xf32>
    %17 = tpu.matmul %16, %14, %cst_14 {dimension_numbers = #tpu.dot_dimension_numbers<[1], [0], [0], [1], [0, 0, 1, 1], [], []>} : vector<32x32xf32>, vector<32x128xf32>, vector<32x128xf32> -> vector<32x128xf32>
    %c1_15 = arith.constant 1 : index
    %c0_16 = arith.constant 0 : index
    %c0_17 = arith.constant 0 : index
    %18 = vector.load %arg5[%c1_15, %c0_16, %c0_17] : memref<2x32x1xf32, #tpu.memory_space<vmem>>, vector<1x32x1xf32>
    %19 = vector.shape_cast %18 : vector<1x32x1xf32> to vector<32x1xf32>
    %20 = vector.broadcast %19 : vector<32x1xf32> to vector<32x128xf32>
    %21 = arith.addf %17, %20 : vector<32x128xf32>
    %22 = math.tanh %21 : vector<32x128xf32>
    %c0_18 = arith.constant 0 : index
    %c0_19 = arith.constant 0 : index
    %23 = vector.load %arg6[%c0_18, %c0_19] : memref<6x32xf32, #tpu.memory_space<vmem>>, vector<6x32xf32>
    %cst_20 = arith.constant dense<0.000000e+00> : vector<6x128xf32>
    %24 = tpu.matmul %23, %22, %cst_20 {dimension_numbers = #tpu.dot_dimension_numbers<[1], [0], [0], [1], [0, 0, 1, 1], [], []>} : vector<6x32xf32>, vector<32x128xf32>, vector<6x128xf32> -> vector<6x128xf32>
    %c0_21 = arith.constant 0 : index
    %c0_22 = arith.constant 0 : index
    %25 = vector.load %arg7[%c0_21, %c0_22] : memref<6x1xf32, #tpu.memory_space<vmem>>, vector<6x1xf32>
    %26 = vector.broadcast %25 : vector<6x1xf32> to vector<6x128xf32>
    %27 = arith.addf %24, %26 : vector<6x128xf32>
    %c0_23 = arith.constant 0 : index
    %c0_24 = arith.constant 0 : index
    %28 = vector.load %arg8[%c0_23, %c0_24] : memref<6x128xf32, #tpu.memory_space<vmem>>, vector<6x128xf32>
    tpu.vector_store %arg8[%c0_23, %c0_24], %27 {strides = array<i32>} : memref<6x128xf32, #tpu.memory_space<vmem>>, vector<6x128xf32>,
    return
  }
  func.func @transform_0(%arg0: i32) -> (i32, i32) {
    %c0_i32 = arith.constant 0 : i32
    %c0_i32_0 = arith.constant 0 : i32
    return %c0_i32, %arg0 : i32, i32
  }
  func.func @transform_1(%arg0: i32) -> (i32, i32) {
    %c0_i32 = arith.constant 0 : i32
    %c0_i32_0 = arith.constant 0 : i32
    %c0_i32_1 = arith.constant 0 : i32
    return %c0_i32, %c0_i32_0 : i32, i32
  }
  func.func @transform_2(%arg0: i32) -> (i32, i32) {
    %c0_i32 = arith.constant 0 : i32
    %c0_i32_0 = arith.constant 0 : i32
    %c0_i32_1 = arith.constant 0 : i32
    return %c0_i32, %c0_i32_0 : i32, i32
  }
  func.func @transform_3(%arg0: i32) -> (i32, i32, i32) {
    %c0_i32 = arith.constant 0 : i32
    %c0_i32_0 = arith.constant 0 : i32
    %c0_i32_1 = arith.constant 0 : i32
    %c0_i32_2 = arith.constant 0 : i32
    return %c0_i32, %c0_i32_0, %c0_i32_1 : i32, i32, i32
  }
  func.func @transform_4(%arg0: i32) -> (i32, i32, i32) {
    %c0_i32 = arith.constant 0 : i32
    %c0_i32_0 = arith.constant 0 : i32
    %c0_i32_1 = arith.constant 0 : i32
    %c0_i32_2 = arith.constant 0 : i32
    return %c0_i32, %c0_i32_0, %c0_i32_1 : i32, i32, i32
  }
  func.func @transform_5(%arg0: i32) -> (i32, i32) {
    %c0_i32 = arith.constant 0 : i32
    %c0_i32_0 = arith.constant 0 : i32
    %c0_i32_1 = arith.constant 0 : i32
    return %c0_i32, %c0_i32_0 : i32, i32
  }
  func.func @transform_6(%arg0: i32) -> (i32, i32) {
    %c0_i32 = arith.constant 0 : i32
    %c0_i32_0 = arith.constant 0 : i32
    %c0_i32_1 = arith.constant 0 : i32
    return %c0_i32, %c0_i32_0 : i32, i32
  }
  func.func @transform_7(%arg0: i32) -> (i32, i32) {
    %c0_i32 = arith.constant 0 : i32
    %c0_i32_0 = arith.constant 0 : i32
    return %c0_i32, %arg0 : i32, i32
  }
}

</mosaic_0001>

<llo_original>
// kernel: tpu_custom_call.1
$region0: #{tpu_custom_call.1}
  #allocation0 [shape = 'u32[]', space=smem, size = 0x4, offset = 0x4, fixed_abs, tag = 'smem constant byte address 0x4 - core index']
  #allocation1 [shape = 'u32[144,128]{1,0:T(1,128)}', space=vmem, size = 0x12000, scoped, tag = 'internal scratch']
  %s0 = inlined_call_operand.vmem [shape: f32[6,256], index: 0, kind: input, shape index: {}]
  %s1 = inlined_call_operand.vmem [shape: f32[32,6], index: 1, kind: input, shape index: {}]
  %s2 = inlined_call_operand.vmem [shape: f32[32,1], index: 2, kind: input, shape index: {}]
  %s3 = inlined_call_operand.vmem [shape: f32[2,32,32], index: 3, kind: input, shape index: {}]
  %s4 = inlined_call_operand.vmem [shape: f32[2,32,1], index: 4, kind: input, shape index: {}]
  %s5 = inlined_call_operand.vmem [shape: f32[6,32], index: 5, kind: input, shape index: {}]
  %s6 = inlined_call_operand.vmem [shape: f32[6,1], index: 6, kind: input, shape index: {}]
  %s7 = inlined_call_operand.hbm [shape: f32[6,256], index: 7, kind: output, shape index: {}]
  %s8 = sld [smem:[#allocation0]]
  $region61: #{tpu_custom_call.1} parent=0
    _
  %s10 = ssub.s32 1, %s8
  %s11 = scalar_select 0, %s10, %s8
  $region1: #{tpu_custom_call.1} parent=0
    #allocation2 [shape = 'u8[8192]{0}', space=vmem, size = 0x2000, scoped, tag = 'output window, operand 0']
    #allocation3 [shape = 's32[2]{0}', space=sflag, size = 0x8, scoped, tag = 'scoped memory for tpu_custom_call.1']
    %12 = vsyncpa [#allocation3], 0
    %s13 = scalar_lea.sflag [#allocation3], 1
    %14 = vsyncpa %s13, 0
    loop: start=0, step=1, limit=4
    $region2: #{tpu_custom_call.1} parent=1 // loop_pre_header
      _
    $region3: #{tpu_custom_call.1} parent=1 // loop_header
      %s16 = sphi 0, %s20
      %p17 = scmp.ge.s32.totalorder %s16, 4
      %s26 = sphi 0, %s28
      %s29 = sphi 0, %s26
      %s30 = sphi 0, %s29
      %s46 = sphi 0, %s30
      %s50 = sphi 0, %s50
      %s52 = sphi 0, %s50
      %s53 = sphi 0, %s52
      %s67 = sphi 0, %s53
      %s71 = sphi 0, %s71
      %s73 = sphi 0, %s71
      %s74 = sphi 0, %s73
      %s88 = sphi 0, %s74
      %s92 = sphi 0, %s92
      %s94 = sphi 0, %s92
      %s95 = sphi 0, %s94
      %s109 = sphi 0, %s95
      %s113 = sphi 0, %s113
      %s115 = sphi 0, %s113
      %s116 = sphi 0, %s115
      %s130 = sphi 0, %s116
      %s134 = sphi 0, %s134
      %s136 = sphi 0, %s134
      %s137 = sphi 0, %s136
      %s151 = sphi 0, %s137
      %s155 = sphi 0, %s155
      %s157 = sphi 0, %s155
      %s158 = sphi 0, %s157
      %s172 = sphi 0, %s158
      %s178 = sphi 0, %s180
      %s181 = sphi 0, %s178
      %s182 = sphi 0, %s181
      %s198 = sphi 0, %s182
    $region4: #{tpu_custom_call.1} parent=1 // loop_header_branch
      %19 = sbr.rel (%p17) target = $region8
    $region5: #{tpu_custom_call.1} parent=1 // loop_body
      %s21 = ssub.s32 %s16, 1
      %s22 = ssub.s32 %s16, 2
      %s23 = sadd.s32 %s16, 1
      %s24 = ssub.s32 %s16, %s23
      %p25 = scmp.eq.s32.totalorder %s24, 0
      %s27 = sadd.s32 %s26, 1
      %s28 = scalar_select %p25, %s26, %s27
      %p31 = pneg %p25
      %p32 = scmp.eq.s32.totalorder %s16, 1
      %p33 = por %p31, %p32
      %p34 = scmp.ne.s32.totalorder %s26, %s29
      %p35 = scmp.eq.s32.totalorder %s16, 0
      %p36 = por %p34, %p35
      %p37 = scmp.ne.s32.totalorder %s26, %s29
      %p38 = scmp.eq.s32.totalorder %s21, 1
      %p39 = por %p37, %p38
      %p40 = scmp.ne.s32.totalorder %s29, %s30
      %p41 = scmp.eq.s32.totalorder %s21, 0
      %p42 = por %p40, %p41
      %p43 = scmp.ne.s32.totalorder %s29, %s30
      %p44 = scmp.eq.s32.totalorder %s22, 1
      %p45 = por %p43, %p44
      %p47 = scmp.ne.s32.totalorder %s30, %s46
      %p48 = scmp.eq.s32.totalorder %s22, 0
      %p49 = por %p47, %p48
      %s51 = sadd.s32 %s50, 1
      %p54 = scmp.eq.s32.totalorder %s16, 1
      %p55 = scmp.ne.s32.totalorder %s50, %s52
      %p56 = scmp.eq.s32.totalorder %s16, 0
      %p57 = por %p55, %p56
      %p58 = scmp.ne.s32.totalorder %s50, %s52
      %p59 = scmp.eq.s32.totalorder %s21, 1
      %p60 = por %p58, %p59
      %p61 = scmp.ne.s32.totalorder %s52, %s53
      %p62 = scmp.eq.s32.totalorder %s21, 0
      %p63 = por %p61, %p62
      %p64 = scmp.ne.s32.totalorder %s52, %s53
      %p65 = scmp.eq.s32.totalorder %s22, 1
      %p66 = por %p64, %p65
      %p68 = scmp.ne.s32.totalorder %s53, %s67
      %p69 = scmp.eq.s32.totalorder %s22, 0
      %p70 = por %p68, %p69
      %s72 = sadd.s32 %s71, 1
      %p75 = scmp.eq.s32.totalorder %s16, 1
      %p76 = scmp.ne.s32.totalorder %s71, %s73
      %p77 = scmp.eq.s32.totalorder %s16, 0
      %p78 = por %p76, %p77
      %p79 = scmp.ne.s32.totalorder %s71, %s73
      %p80 = scmp.eq.s32.totalorder %s21, 1
      %p81 = por %p79, %p80
      %p82 = scmp.ne.s32.totalorder %s73, %s74
      %p83 = scmp.eq.s32.totalorder %s21, 0
      %p84 = por %p82, %p83
      %p85 = scmp.ne.s32.totalorder %s73, %s74
      %p86 = scmp.eq.s32.totalorder %s22, 1
      %p87 = por %p85, %p86
      %p89 = scmp.ne.s32.totalorder %s74, %s88
      %p90 = scmp.eq.s32.totalorder %s22, 0
      %p91 = por %p89, %p90
      %s93 = sadd.s32 %s92, 1
      %p96 = scmp.eq.s32.totalorder %s16, 1
      %p97 = scmp.ne.s32.totalorder %s92, %s94
      %p98 = scmp.eq.s32.totalorder %s16, 0
      %p99 = por %p97, %p98
      %p100 = scmp.ne.s32.totalorder %s92, %s94
      %p101 = scmp.eq.s32.totalorder %s21, 1
      %p102 = por %p100, %p101
      %p103 = scmp.ne.s32.totalorder %s94, %s95
      %p104 = scmp.eq.s32.totalorder %s21, 0
      %p105 = por %p103, %p104
      %p106 = scmp.ne.s32.totalorder %s94, %s95
      %p107 = scmp.eq.s32.totalorder %s22, 1
      %p108 = por %p106, %p107
      %p110 = scmp.ne.s32.totalorder %s95, %s109
      %p111 = scmp.eq.s32.totalorder %s22, 0
      %p112 = por %p110, %p111
      %s114 = sadd.s32 %s113, 1
      %p117 = scmp.eq.s32.totalorder %s16, 1
      %p118 = scmp.ne.s32.totalorder %s113, %s115
      %p119 = scmp.eq.s32.totalorder %s16, 0
      %p120 = por %p118, %p119
      %p121 = scmp.ne.s32.totalorder %s113, %s115
      %p122 = scmp.eq.s32.totalorder %s21, 1
      %p123 = por %p121, %p122
      %p124 = scmp.ne.s32.totalorder %s115, %s116
      %p125 = scmp.eq.s32.totalorder %s21, 0
      %p126 = por %p124, %p125
      %p127 = scmp.ne.s32.totalorder %s115, %s116
      %p128 = scmp.eq.s32.totalorder %s22, 1
      %p129 = por %p127, %p128
      %p131 = scmp.ne.s32.totalorder %s116, %s130
      %p132 = scmp.eq.s32.totalorder %s22, 0
      %p133 = por %p131, %p132
      %s135 = sadd.s32 %s134, 1
      %p138 = scmp.eq.s32.totalorder %s16, 1
      %p139 = scmp.ne.s32.totalorder %s134, %s136
      %p140 = scmp.eq.s32.totalorder %s16, 0
      %p141 = por %p139, %p140
      %p142 = scmp.ne.s32.totalorder %s134, %s136
      %p143 = scmp.eq.s32.totalorder %s21, 1
      %p144 = por %p142, %p143
      %p145 = scmp.ne.s32.totalorder %s136, %s137
      %p146 = scmp.eq.s32.totalorder %s21, 0
      %p147 = por %p145, %p146
      %p148 = scmp.ne.s32.totalorder %s136, %s137
      %p149 = scmp.eq.s32.totalorder %s22, 1
      %p150 = por %p148, %p149
      %p152 = scmp.ne.s32.totalorder %s137, %s151
      %p153 = scmp.eq.s32.totalorder %s22, 0
      %p154 = por %p152, %p153
      %s156 = sadd.s32 %s155, 1
      %p159 = scmp.eq.s32.totalorder %s16, 1
      %p160 = scmp.ne.s32.totalorder %s155, %s157
      %p161 = scmp.eq.s32.totalorder %s16, 0
      %p162 = por %p160, %p161
      %p163 = scmp.ne.s32.totalorder %s155, %s157
      %p164 = scmp.eq.s32.totalorder %s21, 1
      %p165 = por %p163, %p164
      %p166 = scmp.ne.s32.totalorder %s157, %s158
      %p167 = scmp.eq.s32.totalorder %s21, 0
      %p168 = por %p166, %p167
      %p169 = scmp.ne.s32.totalorder %s157, %s158
      %p170 = scmp.eq.s32.totalorder %s22, 1
      %p171 = por %p169, %p170
      %p173 = scmp.ne.s32.totalorder %s158, %s172
      %p174 = scmp.eq.s32.totalorder %s22, 0
      %p175 = por %p173, %p174
      %s176 = ssub.s32 %s16, %s23
      %p177 = scmp.eq.s32.totalorder %s176, 0
      %s179 = sadd.s32 %s178, 1
      %s180 = scalar_select %p177, %s178, %s179
      %p183 = pneg %p177
      %p184 = scmp.eq.s32.totalorder %s16, 1
      %p185 = por %p183, %p184
      %p186 = scmp.ne.s32.totalorder %s178, %s181
      %p187 = scmp.eq.s32.totalorder %s16, 0
      %p188 = por %p186, %p187
      %p189 = scmp.ne.s32.totalorder %s178, %s181
      %p190 = scmp.eq.s32.totalorder %s21, 1
      %p191 = por %p189, %p190
      %p192 = scmp.ne.s32.totalorder %s181, %s182
      %p193 = scmp.eq.s32.totalorder %s21, 0
      %p194 = por %p192, %p193
      %p195 = scmp.ne.s32.totalorder %s181, %s182
      %p196 = scmp.eq.s32.totalorder %s22, 1
      %p197 = por %p195, %p196
      %p199 = scmp.ne.s32.totalorder %s182, %s198
      %p200 = scmp.eq.s32.totalorder %s22, 0
      %p201 = por %p199, %p200
      %p202 = scmp.le.s32.totalorder 1, %s16
      %p203 = scmp.lt.s32.totalorder %s16, 3
      %p204 = pnand %p202, %p203
      %p205 = pneg %p204
      // Predicated region
      $region9: #{tpu_custom_call.1} parent=5 // pred_check
        _
      $region10: #{tpu_custom_call.1} parent=5 // pred_check_branch
        %207 = sbr.rel (%p204) target = $region12
      $region11: #{tpu_custom_call.1} parent=5 // pred_region
        %s208 = ssub.s32 %s16, 1
        // Predicated region
        $region13: #{tpu_custom_call.1} parent=11 // pred_check
          %p209 = pneg %p63
        $region14: #{tpu_custom_call.1} parent=11 // pred_check_branch
          %211 = sbr.rel (%p209) target = $region16
        $region15: #{tpu_custom_call.1} parent=11 // pred_region
          _
        $region16: #{tpu_custom_call.1} parent=11 // pred_fallthru
          _
        // Predicated region
        $region17: #{tpu_custom_call.1} parent=11 // pred_check
          %p212 = pneg %p84
        $region18: #{tpu_custom_call.1} parent=11 // pred_check_branch
          %214 = sbr.rel (%p212) target = $region20
        $region19: #{tpu_custom_call.1} parent=11 // pred_region
          _
        $region20: #{tpu_custom_call.1} parent=11 // pred_fallthru
          _
        // Predicated region
        $region21: #{tpu_custom_call.1} parent=11 // pred_check
          %p215 = pneg %p105
        $region22: #{tpu_custom_call.1} parent=11 // pred_check_branch
          %217 = sbr.rel (%p215) target = $region24
        $region23: #{tpu_custom_call.1} parent=11 // pred_region
          _
        $region24: #{tpu_custom_call.1} parent=11 // pred_fallthru
          _
        // Predicated region
        $region25: #{tpu_custom_call.1} parent=11 // pred_check
          %p218 = pneg %p126
        $region26: #{tpu_custom_call.1} parent=11 // pred_check_branch
          %220 = sbr.rel (%p218) target = $region28
        $region27: #{tpu_custom_call.1} parent=11 // pred_region
          _
        $region28: #{tpu_custom_call.1} parent=11 // pred_fallthru
          _
        // Predicated region
        $region29: #{tpu_custom_call.1} parent=11 // pred_check
          %p221 = pneg %p147
        $region30: #{tpu_custom_call.1} parent=11 // pred_check_branch
          %223 = sbr.rel (%p221) target = $region32
        $region31: #{tpu_custom_call.1} parent=11 // pred_region
          _
        $region32: #{tpu_custom_call.1} parent=11 // pred_fallthru
          _
        // Predicated region
        $region33: #{tpu_custom_call.1} parent=11 // pred_check
          %p224 = pneg %p168
        $region34: #{tpu_custom_call.1} parent=11 // pred_check_branch
          %226 = sbr.rel (%p224) target = $region36
        $region35: #{tpu_custom_call.1} parent=11 // pred_region
          _
        $region36: #{tpu_custom_call.1} parent=11 // pred_fallthru
          _
      $region12: #{tpu_custom_call.1} parent=5 // pred_fallthru
        _
      %p227 = scmp.lt.s32.totalorder %s16, 2
      // Predicated region
      $region37: #{tpu_custom_call.1} parent=5 // pred_check
        %p228 = pneg %p227
      $region38: #{tpu_custom_call.1} parent=5 // pred_check_branch
        %230 = sbr.rel (%p228) target = $region40
      $region39: #{tpu_custom_call.1} parent=5 // pred_region
        // Predicated region
        $region41: #{tpu_custom_call.1} parent=39 // pred_check
          %p231 = pneg %p36
        $region42: #{tpu_custom_call.1} parent=39 // pred_check_branch
          %233 = sbr.rel (%p231) target = $region44
        $region43: #{tpu_custom_call.1} parent=39 // pred_region
          %p234 = scmp.lt.s32.totalorder %s16, 1
          %s235 = scalar_select %p234, %s16, 1
          %s236 = smul.addr %s235, 8
          %s237 = scalar_lea.vmem %s0, %s236
        $region44: #{tpu_custom_call.1} parent=39 // pred_fallthru
          _
      $region40: #{tpu_custom_call.1} parent=5 // pred_fallthru
        _
      %p238 = scmp.le.s32.totalorder 1, %s16
      %p239 = scmp.lt.s32.totalorder %s16, 3
      %p240 = pnand %p238, %p239
      %p241 = pneg %p240
      // Predicated region
      $region45: #{tpu_custom_call.1} parent=5 // pred_check
        _
      $region46: #{tpu_custom_call.1} parent=5 // pred_check_branch
        %243 = sbr.rel (%p240) target = $region48
      $region47: #{tpu_custom_call.1} parent=5 // pred_region
        %s244 = ssub.s32 %s16, 1
        %p245 = scmp.lt.s32.totalorder %s21, 1
        %s246 = scalar_select %p245, %s21, 1
        %s247 = smul.addr %s246, 8
        %s248 = scalar_lea.vmem %s0, %s247
        %p249 = pneg %p42
        %p250 = pneg %p39
        %p251 = pneg %p63
        %p252 = pneg %p60
        %p253 = pneg %p84
        %p254 = pneg %p81
        %p255 = pneg %p105
        %p256 = pneg %p102
        %p257 = pneg %p126
        %p258 = pneg %p123
        %p259 = pneg %p147
        %p260 = pneg %p144
        %p261 = pneg %p168
        %p262 = pneg %p165
        %p263 = pneg %p194
        %p264 = pneg %p191
        %s265 = sand.u32 %s181, 1
        %s266 = scalar_lea.sflag [#allocation3], %s265
        %s267 = sand.u32 %s181, 1
        %s268 = smul.addr %s267, 8
        %s269 = scalar_lea.vmem [#allocation2], %s268
        %p270 = scmp.lt.s32.totalorder %s21, 1
        %s271 = scalar_select %p270, %s21, 1
        %s272 = smul.addr %s271, 8
        %s273 = scalar_lea.vmem %s0, %s272
        %v274 = vld [vmem:[%s273] sm:$0x3f]
        %v275 = vld [vmem:[%s1] sm:$0xff]
        %v276 = vld [vmem:[%s1 + $0x8] sm:$0xff]
        %v277 = vld [vmem:[%s1 + $0x10] sm:$0xff]
        %v278 = vld [vmem:[%s1 + $0x18] sm:$0xff]
        %v279 = vld [vmem:[%s2] sm:$0xff]
        %v280 = vld [vmem:[%s2 + $0x8] sm:$0xff]
        %v281 = vld [vmem:[%s2 + $0x10] sm:$0xff]
        %v282 = vld [vmem:[%s2 + $0x18] sm:$0xff]
        %284 = vset.pattern.permute.xlu0 0
        %285 = vperm.xlu0 %284, %v279
        %v286 = vpop.permute.xlu0 %285
        %289 = vset.pattern.permute.xlu0 0
        %290 = vperm.xlu0 %289, %v280
        %v291 = vpop.permute.xlu0 %290
        %294 = vset.pattern.permute.xlu0 0
        %295 = vperm.xlu0 %294, %v281
        %v296 = vpop.permute.xlu0 %295
        %299 = vset.pattern.permute.xlu0 0
        %300 = vperm.xlu0 %299, %v282
        %v301 = vpop.permute.xlu0 %300
        %vm303 = vcmask 48128
        %v305 = vsel %vm303, %v275, 0
        %v308 = vsel %vm303, %v276, 0
        %v311 = vsel %vm303, %v277, 0
        %v314 = vsel %vm303, %v278, 0
        %vm316 = vcmask 1045504
        %v318 = vsel %vm316, %v274, 0
        %320 = vmatprep.subr.mxu0 0.0
        %321 = vmatpush1.msra.mxu0 %v318
        %322 = vmatprep.subr.mxu0 0.0
        %323 = vmatpush1.msra.mxu0 0.0
        %324 = vmatprep.subr.mxu0 0.0
        %325 = vmatpush1.msra.mxu0 0.0
        %326 = vmatprep.subr.mxu0 0.0
        %327 = vmatpush1.msra.mxu0 0.0
        %328 = vmatprep.subr.mxu0 0.0
        %329 = vmatpush1.msra.mxu0 0.0
        %330 = vmatprep.subr.mxu0 0.0
        %331 = vmatpush1.msra.mxu0 0.0
        %332 = vmatprep.subr.mxu0 0.0
        %333 = vmatpush1.msra.mxu0 0.0
        %334 = vmatprep.subr.mxu0 0.0
        %335 = vmatpush1.msra.mxu0 0.0
        %336 = vmatprep.subr.mxu0 0.0
        %337 = vmatpush1.msra.mxu0 0.0
        %338 = vmatprep.subr.mxu0 0.0
        %339 = vmatpush1.msra.mxu0 0.0
        %340 = vmatprep.subr.mxu0 0.0
        %341 = vmatpush1.msra.mxu0 0.0
        %342 = vmatprep.subr.mxu0 0.0
        %343 = vmatpush1.msra.mxu0 0.0
        %344 = vmatprep.subr.mxu0 0.0
        %345 = vmatpush1.msra.mxu0 0.0
        %346 = vmatprep.subr.mxu0 0.0
        %347 = vmatpush1.msra.mxu0 0.0
        %348 = vmatprep.subr.mxu0 0.0
        %349 = vmatpush1.msra.mxu0 0.0
        %350 = vmatprep.subr.mxu0 0.0
        %351 = vmatpush1.msra.mxu0 0.0
        %352 = vmatprep.subr.mxu0 0.0
        %353 = vmatpush1.msra.mxu0 0.0
        %354 = vmatprep.subr.mxu0 0.0
        %355 = vmatpush1.msra.mxu0 0.0
        %356 = vmatprep.subr.mxu0 0.0
        %357 = vmatpush1.msra.mxu0 0.0
        %358 = vmatprep.subr.mxu0 0.0
        %359 = vmatpush1.msra.mxu0 0.0
        %360 = vmatprep.subr.mxu0 0.0
        %361 = vmatpush1.msra.mxu0 0.0
        %362 = vmatprep.subr.mxu0 0.0
        %363 = vmatpush1.msra.mxu0 0.0
        %364 = vmatprep.subr.mxu0 0.0
        %365 = vmatpush1.msra.mxu0 0.0
        %366 = vmatprep.subr.mxu0 0.0
        %367 = vmatpush1.msra.mxu0 0.0
        %368 = vmatprep.subr.mxu0 0.0
        %369 = vmatpush1.msra.mxu0 0.0
        %370 = vmatprep.subr.mxu0 0.0
        %371 = vmatpush1.msra.mxu0 0.0
        %372 = vmatprep.subr.mxu0 0.0
        %373 = vmatpush1.msra.mxu0 0.0
        %374 = vmatprep.subr.mxu0 0.0
        %375 = vmatpush1.msra.mxu0 0.0
        %376 = vmatprep.subr.mxu0 0.0
        %377 = vmatpush1.msra.mxu0 0.0
        %378 = vmatprep.subr.mxu0 0.0
        %379 = vmatpush1.msra.mxu0 0.0
        %380 = vmatprep.subr.mxu0 0.0
        %381 = vmatpush1.msra.mxu0 0.0
        %382 = vmatprep.subr.mxu0 0.0
        %383 = vmatpush1.msra.mxu0 0.0
        %384 = vmatprep.mubr.f32.mxu0 0.0
        %385 = vmatmul.mubr.f32.gmra.mrb[0].mxu0 %v305
        %v386 = vpop.f32.mrb[0].mxu0
        %v387 = vadd.f32 %v286, %v386
        %v388 = vpop.f32.mrb[0].mxu0
        %389 = vmatprep.mubr.f32.mxu0 0.0
        %390 = vmatmul.mubr.f32.gmra.mrb[0].mxu0 %v308
        %v391 = vpop.f32.mrb[0].mxu0
        %v392 = vadd.f32 %v291, %v391
        %v393 = vpop.f32.mrb[0].mxu0
        %394 = vmatprep.mubr.f32.mxu0 0.0
        %395 = vmatmul.mubr.f32.gmra.mrb[0].mxu0 %v311
        %v396 = vpop.f32.mrb[0].mxu0
        %v397 = vadd.f32 %v296, %v396
        %v398 = vpop.f32.mrb[0].mxu0
        %399 = vmatprep.mubr.f32.mxu0 0.0
        %400 = vmatmul.mubr.f32.gmra.mrb[0].mxu0 %v314
        %v401 = vpop.f32.mrb[0].mxu0
        %v402 = vadd.f32 %v301, %v401
        %v403 = vpop.f32.mrb[0].mxu0
        %404 = vdwg.mxu0
        %v405 = vtanh.pop %v387
        %v406 = vtanh.pop %v392
        %v407 = vtanh.pop %v397
        %v408 = vtanh.pop %v402
        %v409 = vld [vmem:[%s3] sm:$0xff]
        %v410 = vld [vmem:[%s3 + $0x8] sm:$0xff]
        %v411 = vld [vmem:[%s3 + $0x10] sm:$0xff]
        %v412 = vld [vmem:[%s3 + $0x18] sm:$0xff]
        %v413 = vld [vmem:[%s4] sm:$0xff]
        %v414 = vld [vmem:[%s4 + $0x8] sm:$0xff]
        %v415 = vld [vmem:[%s4 + $0x10] sm:$0xff]
        %v416 = vld [vmem:[%s4 + $0x18] sm:$0xff]
        %418 = vset.pattern.permute.xlu0 0
        %419 = vperm.xlu0 %418, %v413
        %v420 = vpop.permute.xlu0 %419
        %423 = vset.pattern.permute.xlu0 0
        %424 = vperm.xlu0 %423, %v414
        %v425 = vpop.permute.xlu0 %424
        %428 = vset.pattern.permute.xlu0 0
        %429 = vperm.xlu0 %428, %v415
        %v430 = vpop.permute.xlu0 %429
        %433 = vset.pattern.permute.xlu0 0
        %434 = vperm.xlu0 %433, %v416
        %v435 = vpop.permute.xlu0 %434
        %vm437 = vcmask 261120
        %v439 = vsel %vm437, %v409, 0
        %v442 = vsel %vm437, %v410, 0
        %v445 = vsel %vm437, %v411, 0
        %v448 = vsel %vm437, %v412, 0
        %450 = vmatprep.subr.mxu0 0.0
        %451 = vmatpush1.msra.mxu0 %v405
        %452 = vmatprep.subr.mxu0 0.0
        %453 = vmatpush1.msra.mxu0 %v406
        %454 = vmatprep.subr.mxu0 0.0
        %455 = vmatpush1.msra.mxu0 %v407
        %456 = vmatprep.subr.mxu0 0.0
        %457 = vmatpush1.msra.mxu0 %v408
        %458 = vmatprep.subr.mxu0 0.0
        %459 = vmatpush1.msra.mxu0 0.0
        %460 = vmatprep.subr.mxu0 0.0
        %461 = vmatpush1.msra.mxu0 0.0
        %462 = vmatprep.subr.mxu0 0.0
        %463 = vmatpush1.msra.mxu0 0.0
        %464 = vmatprep.subr.mxu0 0.0
        %465 = vmatpush1.msra.mxu0 0.0
        %466 = vmatprep.subr.mxu0 0.0
        %467 = vmatpush1.msra.mxu0 0.0
        %468 = vmatprep.subr.mxu0 0.0
        %469 = vmatpush1.msra.mxu0 0.0
        %470 = vmatprep.subr.mxu0 0.0
        %471 = vmatpush1.msra.mxu0 0.0
        %472 = vmatprep.subr.mxu0 0.0
        %473 = vmatpush1.msra.mxu0 0.0
        %474 = vmatprep.subr.mxu0 0.0
        %475 = vmatpush1.msra.mxu0 0.0
        %476 = vmatprep.subr.mxu0 0.0
        %477 = vmatpush1.msra.mxu0 0.0
        %478 = vmatprep.subr.mxu0 0.0
        %479 = vmatpush1.msra.mxu0 0.0
        %480 = vmatprep.subr.mxu0 0.0
        %481 = vmatpush1.msra.mxu0 0.0
        %482 = vmatprep.subr.mxu0 0.0
        %483 = vmatpush1.msra.mxu0 0.0
        %484 = vmatprep.subr.mxu0 0.0
        %485 = vmatpush1.msra.mxu0 0.0
        %486 = vmatprep.subr.mxu0 0.0
        %487 = vmatpush1.msra.mxu0 0.0
        %488 = vmatprep.subr.mxu0 0.0
        %489 = vmatpush1.msra.mxu0 0.0
        %490 = vmatprep.subr.mxu0 0.0
        %491 = vmatpush1.msra.mxu0 0.0
        %492 = vmatprep.subr.mxu0 0.0
        %493 = vmatpush1.msra.mxu0 0.0
        %494 = vmatprep.subr.mxu0 0.0
        %495 = vmatpush1.msra.mxu0 0.0
        %496 = vmatprep.subr.mxu0 0.0
        %497 = vmatpush1.msra.mxu0 0.0
        %498 = vmatprep.subr.mxu0 0.0
        %499 = vmatpush1.msra.mxu0 0.0
        %500 = vmatprep.subr.mxu0 0.0
        %501 = vmatpush1.msra.mxu0 0.0
        %502 = vmatprep.subr.mxu0 0.0
        %503 = vmatpush1.msra.mxu0 0.0
        %504 = vmatprep.subr.mxu0 0.0
        %505 = vmatpush1.msra.mxu0 0.0
        %506 = vmatprep.subr.mxu0 0.0
        %507 = vmatpush1.msra.mxu0 0.0
        %508 = vmatprep.subr.mxu0 0.0
        %509 = vmatpush1.msra.mxu0 0.0
        %510 = vmatprep.subr.mxu0 0.0
        %511 = vmatpush1.msra.mxu0 0.0
        %512 = vmatprep.subr.mxu0 0.0
        %513 = vmatpush1.msra.mxu0 0.0
        %514 = vmatprep.mubr.f32.mxu0 0.0
        %515 = vmatmul.mubr.f32.gmra.mrb[0].mxu0 %v439
        %v516 = vpop.f32.mrb[0].mxu0
        %v517 = vadd.f32 %v420, %v516
        %v518 = vpop.f32.mrb[0].mxu0
        %519 = vmatprep.mubr.f32.mxu0 0.0
        %520 = vmatmul.mubr.f32.gmra.mrb[0].mxu0 %v442
        %v521 = vpop.f32.mrb[0].mxu0
        %v522 = vadd.f32 %v425, %v521
        %v523 = vpop.f32.mrb[0].mxu0
        %524 = vmatprep.mubr.f32.mxu0 0.0
        %525 = vmatmul.mubr.f32.gmra.mrb[0].mxu0 %v445
        %v526 = vpop.f32.mrb[0].mxu0
        %v527 = vadd.f32 %v430, %v526
        %v528 = vpop.f32.mrb[0].mxu0
        %529 = vmatprep.mubr.f32.mxu0 0.0
        %530 = vmatmul.mubr.f32.gmra.mrb[0].mxu0 %v448
        %v531 = vpop.f32.mrb[0].mxu0
        %v532 = vadd.f32 %v435, %v531
        %v533 = vpop.f32.mrb[0].mxu0
        %534 = vdwg.mxu0
        %v535 = vtanh.pop %v517
        %v536 = vtanh.pop %v522
        %v537 = vtanh.pop %v527
        %v538 = vtanh.pop %v532
        %s539 = scalar_lea.vmem %s3, 32
        %v540 = vld [vmem:[%s539] sm:$0xff]
        %v541 = vld [vmem:[%s539 + $0x8] sm:$0xff]
        %v542 = vld [vmem:[%s539 + $0x10] sm:$0xff]
        %v543 = vld [vmem:[%s539 + $0x18] sm:$0xff]
        %s544 = scalar_lea.vmem %s4, 32
        %v545 = vld [vmem:[%s544] sm:$0xff]
        %v546 = vld [vmem:[%s544 + $0x8] sm:$0xff]
        %v547 = vld [vmem:[%s544 + $0x10] sm:$0xff]
        %v548 = vld [vmem:[%s544 + $0x18] sm:$0xff]
        %550 = vset.pattern.permute.xlu0 0
        %551 = vperm.xlu0 %550, %v545
        %v552 = vpop.permute.xlu0 %551
        %555 = vset.pattern.permute.xlu0 0
        %556 = vperm.xlu0 %555, %v546
        %v557 = vpop.permute.xlu0 %556
        %560 = vset.pattern.permute.xlu0 0
        %561 = vperm.xlu0 %560, %v547
        %v562 = vpop.permute.xlu0 %561
        %565 = vset.pattern.permute.xlu0 0
        %566 = vperm.xlu0 %565, %v548
        %v567 = vpop.permute.xlu0 %566
        %v570 = vsel %vm437, %v540, 0
        %v573 = vsel %vm437, %v541, 0
        %v576 = vsel %vm437, %v542, 0
        %v579 = vsel %vm437, %v543, 0
        %581 = vmatprep.subr.mxu0 0.0
        %582 = vmatpush1.msra.mxu0 %v535
        %583 = vmatprep.subr.mxu0 0.0
        %584 = vmatpush1.msra.mxu0 %v536
        %585 = vmatprep.subr.mxu0 0.0
        %586 = vmatpush1.msra.mxu0 %v537
        %587 = vmatprep.subr.mxu0 0.0
        %588 = vmatpush1.msra.mxu0 %v538
        %589 = vmatprep.subr.mxu0 0.0
        %590 = vmatpush1.msra.mxu0 0.0
        %591 = vmatprep.subr.mxu0 0.0
        %592 = vmatpush1.msra.mxu0 0.0
        %593 = vmatprep.subr.mxu0 0.0
        %594 = vmatpush1.msra.mxu0 0.0
        %595 = vmatprep.subr.mxu0 0.0
        %596 = vmatpush1.msra.mxu0 0.0
        %597 = vmatprep.subr.mxu0 0.0
        %598 = vmatpush1.msra.mxu0 0.0
        %599 = vmatprep.subr.mxu0 0.0
        %600 = vmatpush1.msra.mxu0 0.0
        %601 = vmatprep.subr.mxu0 0.0
        %602 = vmatpush1.msra.mxu0 0.0
        %603 = vmatprep.subr.mxu0 0.0
        %604 = vmatpush1.msra.mxu0 0.0
        %605 = vmatprep.subr.mxu0 0.0
        %606 = vmatpush1.msra.mxu0 0.0
        %607 = vmatprep.subr.mxu0 0.0
        %608 = vmatpush1.msra.mxu0 0.0
        %609 = vmatprep.subr.mxu0 0.0
        %610 = vmatpush1.msra.mxu0 0.0
        %611 = vmatprep.subr.mxu0 0.0
        %612 = vmatpush1.msra.mxu0 0.0
        %613 = vmatprep.subr.mxu0 0.0
        %614 = vmatpush1.msra.mxu0 0.0
        %615 = vmatprep.subr.mxu0 0.0
        %616 = vmatpush1.msra.mxu0 0.0
        %617 = vmatprep.subr.mxu0 0.0
        %618 = vmatpush1.msra.mxu0 0.0
        %619 = vmatprep.subr.mxu0 0.0
        %620 = vmatpush1.msra.mxu0 0.0
        %621 = vmatprep.subr.mxu0 0.0
        %622 = vmatpush1.msra.mxu0 0.0
        %623 = vmatprep.subr.mxu0 0.0
        %624 = vmatpush1.msra.mxu0 0.0
        %625 = vmatprep.subr.mxu0 0.0
        %626 = vmatpush1.msra.mxu0 0.0
        %627 = vmatprep.subr.mxu0 0.0
        %628 = vmatpush1.msra.mxu0 0.0
        %629 = vmatprep.subr.mxu0 0.0
        %630 = vmatpush1.msra.mxu0 0.0
        %631 = vmatprep.subr.mxu0 0.0
        %632 = vmatpush1.msra.mxu0 0.0
        %633 = vmatprep.subr.mxu0 0.0
        %634 = vmatpush1.msra.mxu0 0.0
        %635 = vmatprep.subr.mxu0 0.0
        %636 = vmatpush1.msra.mxu0 0.0
        %637 = vmatprep.subr.mxu0 0.0
        %638 = vmatpush1.msra.mxu0 0.0
        %639 = vmatprep.subr.mxu0 0.0
        %640 = vmatpush1.msra.mxu0 0.0
        %641 = vmatprep.subr.mxu0 0.0
        %642 = vmatpush1.msra.mxu0 0.0
        %643 = vmatprep.subr.mxu0 0.0
        %644 = vmatpush1.msra.mxu0 0.0
        %645 = vmatprep.mubr.f32.mxu0 0.0
        %646 = vmatmul.mubr.f32.gmra.mrb[0].mxu0 %v570
        %v647 = vpop.f32.mrb[0].mxu0
        %v648 = vadd.f32 %v552, %v647
        %v649 = vpop.f32.mrb[0].mxu0
        %650 = vmatprep.mubr.f32.mxu0 0.0
        %651 = vmatmul.mubr.f32.gmra.mrb[0].mxu0 %v573
        %v652 = vpop.f32.mrb[0].mxu0
        %v653 = vadd.f32 %v557, %v652
        %v654 = vpop.f32.mrb[0].mxu0
        %655 = vmatprep.mubr.f32.mxu0 0.0
        %656 = vmatmul.mubr.f32.gmra.mrb[0].mxu0 %v576
        %v657 = vpop.f32.mrb[0].mxu0
        %v658 = vadd.f32 %v562, %v657
        %v659 = vpop.f32.mrb[0].mxu0
        %660 = vmatprep.mubr.f32.mxu0 0.0
        %661 = vmatmul.mubr.f32.gmra.mrb[0].mxu0 %v579
        %v662 = vpop.f32.mrb[0].mxu0
        %v663 = vadd.f32 %v567, %v662
        %v664 = vpop.f32.mrb[0].mxu0
        %665 = vdwg.mxu0
        %v666 = vtanh.pop %v648
        %v667 = vtanh.pop %v653
        %v668 = vtanh.pop %v658
        %v669 = vtanh.pop %v663
        %v670 = vld [vmem:[%s5] sm:$0x3f]
        %v671 = vld [vmem:[%s6] sm:$0x3f]
        %673 = vset.pattern.permute.xlu0 0
        %674 = vperm.xlu0 %673, %v671
        %v675 = vpop.permute.xlu0 %674
        %v678 = vsel %vm437, %v670, 0
        %680 = vmatprep.subr.mxu0 0.0
        %681 = vmatpush1.msra.mxu0 %v666
        %682 = vmatprep.subr.mxu0 0.0
        %683 = vmatpush1.msra.mxu0 %v667
        %684 = vmatprep.subr.mxu0 0.0
        %685 = vmatpush1.msra.mxu0 %v668
        %686 = vmatprep.subr.mxu0 0.0
        %687 = vmatpush1.msra.mxu0 %v669
        %688 = vmatprep.subr.mxu0 0.0
        %689 = vmatpush1.msra.mxu0 0.0
        %690 = vmatprep.subr.mxu0 0.0
        %691 = vmatpush1.msra.mxu0 0.0
        %692 = vmatprep.subr.mxu0 0.0
        %693 = vmatpush1.msra.mxu0 0.0
        %694 = vmatprep.subr.mxu0 0.0
        %695 = vmatpush1.msra.mxu0 0.0
        %696 = vmatprep.subr.mxu0 0.0
        %697 = vmatpush1.msra.mxu0 0.0
        %698 = vmatprep.subr.mxu0 0.0
        %699 = vmatpush1.msra.mxu0 0.0
        %700 = vmatprep.subr.mxu0 0.0
        %701 = vmatpush1.msra.mxu0 0.0
        %702 = vmatprep.subr.mxu0 0.0
        %703 = vmatpush1.msra.mxu0 0.0
        %704 = vmatprep.subr.mxu0 0.0
        %705 = vmatpush1.msra.mxu0 0.0
        %706 = vmatprep.subr.mxu0 0.0
        %707 = vmatpush1.msra.mxu0 0.0
        %708 = vmatprep.subr.mxu0 0.0
        %709 = vmatpush1.msra.mxu0 0.0
        %710 = vmatprep.subr.mxu0 0.0
        %711 = vmatpush1.msra.mxu0 0.0
        %712 = vmatprep.subr.mxu0 0.0
        %713 = vmatpush1.msra.mxu0 0.0
        %714 = vmatprep.subr.mxu0 0.0
        %715 = vmatpush1.msra.mxu0 0.0
        %716 = vmatprep.subr.mxu0 0.0
        %717 = vmatpush1.msra.mxu0 0.0
        %718 = vmatprep.subr.mxu0 0.0
        %719 = vmatpush1.msra.mxu0 0.0
        %720 = vmatprep.subr.mxu0 0.0
        %721 = vmatpush1.msra.mxu0 0.0
        %722 = vmatprep.subr.mxu0 0.0
        %723 = vmatpush1.msra.mxu0 0.0
        %724 = vmatprep.subr.mxu0 0.0
        %725 = vmatpush1.msra.mxu0 0.0
        %726 = vmatprep.subr.mxu0 0.0
        %727 = vmatpush1.msra.mxu0 0.0
        %728 = vmatprep.subr.mxu0 0.0
        %729 = vmatpush1.msra.mxu0 0.0
        %730 = vmatprep.subr.mxu0 0.0
        %731 = vmatpush1.msra.mxu0 0.0
        %732 = vmatprep.subr.mxu0 0.0
        %733 = vmatpush1.msra.mxu0 0.0
        %734 = vmatprep.subr.mxu0 0.0
        %735 = vmatpush1.msra.mxu0 0.0
        %736 = vmatprep.subr.mxu0 0.0
        %737 = vmatpush1.msra.mxu0 0.0
        %738 = vmatprep.subr.mxu0 0.0
        %739 = vmatpush1.msra.mxu0 0.0
        %740 = vmatprep.subr.mxu0 0.0
        %741 = vmatpush1.msra.mxu0 0.0
        %742 = vmatprep.subr.mxu0 0.0
        %743 = vmatpush1.msra.mxu0 0.0
        %744 = vmatprep.mubr.f32.mxu0 0.0
        %745 = vmatmul.mubr.f32.gmra.mrb[0].mxu0 %v678
        %v746 = vpop.f32.mrb[0].mxu0
        %v747 = vadd.f32 %v675, %v746
        %v748 = vpop.f32.mrb[0].mxu0
        %749 = vdwg.mxu0
        %750 = vst [vmem:[%s269] sm:$0x3f] %v747
        %s751 = sand.u32 %s181, 1
        %s752 = scalar_lea.sflag [#allocation3], %s751
        %s753 = sand.u32 %s181, 1
        %s754 = smul.addr %s753, 8
        %s755 = scalar_lea.vmem [#allocation2], %s754
        // Predicated region
        $region49: #{tpu_custom_call.1} parent=47 // pred_check
          %p756 = pneg %p191
        $region50: #{tpu_custom_call.1} parent=47 // pred_check_branch
          %758 = sbr.rel (%p756) target = $region52
        $region51: #{tpu_custom_call.1} parent=47 // pred_region
          %s760 = ssub.s32 128, 128
          %761 = vsyncadd %s752, %s760
          %s762 = smul.addr %s21, 128
          %s763 = scalar_lea.hbm %s7, %s762
          %s765 = sshll.u32 %s755, 4
          %s766 = int_to_ptr.vmem [resolvable:$true] %s765
          %768 = dma.vmem_to_hbm [thread:$0]  %s766, 128, %s763, %s752
        $region52: #{tpu_custom_call.1} parent=47 // pred_fallthru
          _
      $region48: #{tpu_custom_call.1} parent=5 // pred_fallthru
        _
      %p769 = scmp.le.s32.totalorder 2, %s16
      // Predicated region
      $region53: #{tpu_custom_call.1} parent=5 // pred_check
        %p770 = pneg %p769
      $region54: #{tpu_custom_call.1} parent=5 // pred_check_branch
        %772 = sbr.rel (%p770) target = $region56
      $region55: #{tpu_custom_call.1} parent=5 // pred_region
        %s773 = ssub.s32 %s16, 2
        // Predicated region
        $region57: #{tpu_custom_call.1} parent=55 // pred_check
          %p774 = pneg %p197
        $region58: #{tpu_custom_call.1} parent=55 // pred_check_branch
          %776 = sbr.rel (%p774) target = $region60
        $region59: #{tpu_custom_call.1} parent=55 // pred_region
          %s777 = sand.u32 %s182, 1
          %s778 = scalar_lea.sflag [#allocation3], %s777
          %s779 = sand.u32 %s182, 1
          %s780 = smul.addr %s779, 8
          %s781 = scalar_lea.vmem [#allocation2], %s780
          %782 = dma.done %s778, 128
        $region60: #{tpu_custom_call.1} parent=55 // pred_fallthru
          _
      $region56: #{tpu_custom_call.1} parent=5 // pred_fallthru
        _
    $region6: #{tpu_custom_call.1} parent=1 // loop_footer
      %s20 = sadd.s32 1, %s16
    $region7: #{tpu_custom_call.1} parent=1 // loop_footer_branch
      %15 = sbr.rel target = $region3
    $region8: #{tpu_custom_call.1} parent=1 // loop_exit
      _
    %783 = vsyncpa [#allocation3], 1
    %s784 = scalar_lea.sflag [#allocation3], 1
    %785 = vsyncpa %s784, 1

</llo_original>
